<compile_context>
chip_gen: v5e
topology: v5e:2x2
jax: 0.10.0
libtpu: 0.0.40
codegen_flags: <defaults>
</compile_context>

<pallas_src>
import functools

import jax
import jax.numpy as jnp
from jax.experimental import pallas as pl
from jax.experimental.pallas import tpu as pltpu


# ----------------------------------------------------------------------------
# Fused kernel: candidate scoring + softmax cross-entropy (target class 0)
# ----------------------------------------------------------------------------
def _recon_ce_kernel(sent_ref, neg_ref, cell_ref, out_ref, *, n_rows, tile_rows):
    i = pl.program_id(0)

    @pl.when(i == 0)
    def _():
        out_ref[...] = jnp.zeros_like(out_ref)

    cell = cell_ref[...].astype(jnp.float32)          # [TM, D]
    sent = sent_ref[...].astype(jnp.float32)          # [TM, D]
    neg = neg_ref[...].astype(jnp.float32)            # [TM, K, D]

    # scores: positive is class 0, negatives are classes 1..K (never stored)
    s_pos = jnp.sum(sent * cell, axis=-1, keepdims=True)              # [TM, 1]
    s_neg = jnp.sum(neg * cell[:, None, :], axis=-1)                  # [TM, K]

    # row-wise softmax cross-entropy with target class 0:
    #   loss_row = logsumexp([s_pos, s_neg]) - s_pos
    m = jnp.maximum(s_pos, jnp.max(s_neg, axis=-1, keepdims=True))    # [TM, 1]
    z = jnp.exp(s_pos - m) + jnp.sum(jnp.exp(s_neg - m), axis=-1, keepdims=True)
    loss_rows = (m + jnp.log(z)) - s_pos                              # [TM, 1]

    # mask padded rows (row index >= n_rows contributes 0)
    row_ids = i * tile_rows + jax.lax.broadcasted_iota(jnp.int32, (tile_rows, 1), 0)
    loss_rows = jnp.where(row_ids < n_rows, loss_rows, 0.0)

    # resident scalar accumulator
    out_ref[...] += jnp.sum(loss_rows, keepdims=True)

    @pl.when(i == pl.num_programs(0) - 1)
    def _():
        out_ref[...] = out_ref[...] * (1.0 / n_rows)                  # mean reduction


def _pad_rows(x, n_pad):
    n = x.shape[0]
    if n_pad == n:
        return x
    pad = [(0, n_pad - n)] + [(0, 0)] * (x.ndim - 1)
    return jnp.pad(x, pad)


def _fused_scores_ce_loss(sent2, neg2, cell2, *, tile_rows=None):
    """sent2: [N, D], neg2: [N, K, D], cell2: [N, D] -> scalar f32 loss."""
    n, d = sent2.shape
    k = neg2.shape[1]

    if tile_rows is None:
        # biggest row tile that keeps double-buffered inputs around ~8 MiB
        # (ample headroom under the 32 MiB scoped default and v7x's 64 MiB VMEM)
        bytes_per_row = (k + 2) * d * 4 * 2          # sent + cell + K negs, 2 bufs
        tile_rows = max(8, min(512, (8 << 20) // max(bytes_per_row, 1)))
    tile_rows = max(8, (min(tile_rows, ((n + 7) // 8) * 8) // 8) * 8)

    n_pad = pl.cdiv(n, tile_rows) * tile_rows
    sent_p = _pad_rows(sent2, n_pad)
    neg_p = _pad_rows(neg2, n_pad)
    cell_p = _pad_rows(cell2, n_pad)

    loss = pl.pallas_call(
        functools.partial(_recon_ce_kernel, n_rows=n, tile_rows=tile_rows),
        out_shape=jax.ShapeDtypeStruct((1, 1), jnp.float32),
        grid=(n_pad // tile_rows,),
        in_specs=[
            pl.BlockSpec((tile_rows, d), lambda i: (i, 0)),       # sentences
            pl.BlockSpec((tile_rows, k, d), lambda i: (i, 0, 0)),  # negatives
            pl.BlockSpec((tile_rows, d), lambda i: (i, 0)),       # outside cells
        ],
        out_specs=pl.BlockSpec((1, 1), lambda i: (0, 0)),          # scalar accumulator
        compiler_params=pltpu.CompilerParams(dimension_semantics=("arbitrary",)),
    )(sent_p, neg_p, cell_p)
    return loss[0, 0]


# ----------------------------------------------------------------------------
# Module: parameters + forward
# ----------------------------------------------------------------------------
def init_params(key, vocab_size, size):
    # reset_parameters(): self.cls.data.normal_()
    # NOTE: `cls` is a registered parameter of the PyTorch module but is not
    # used anywhere in forward(); kept only for state parity.
    return {'cls': jax.random.normal(key, (vocab_size, size), jnp.float32)}


def reconstruction_bert_sim_softmax_loss_forward(params, sentences, negative_samples,
                                                 diora_outside_h, info=None,
                                                 *, tile_rows=None):
    """JAX/Pallas equivalent of ReconstructionBERTSimSoftmaxLoss.forward.

    sentences:        [B, L, D]
    negative_samples: [B, L, K, L, D]   (as in the torch call site)
    diora_outside_h:  [B, ncells>=L, D] (diora.outside_h)
    """
    b, l, d = sentences.shape
    k_neg = negative_samples.shape[2]

    cell = diora_outside_h[:, :l, :].reshape(b, l, d)

    # torch.diagonal(x, dim1=1, dim2=3).permute(0, 3, 1, 2) -> [B, L, K, D]
    # TODO(synk): the tied-index diagonal gather is left to XLA — it is not a
    # rectangular BlockSpec window, and a per-row DMA would be far slower.
    neg = jnp.diagonal(negative_samples, axis1=1, axis2=3)   # [B, K, D, L]
    neg = jnp.transpose(neg, (0, 3, 1, 2))                   # [B, L, K, D]

    n = b * l
    loss = _fused_scores_ce_loss(
        sentences.reshape(n, d),
        neg.reshape(n, k_neg, d),
        cell.reshape(n, d),
        tile_rows=tile_rows)

    ret = {'reconstruct_bert_sim_softmax_loss': loss}
    return loss, ret


# ----------------------------------------------------------------------------
# Demo / self-check
# ----------------------------------------------------------------------------
if __name__ == "__main__":
    key = jax.random.PRNGKey(0)
    k_cls, k_sent, k_negs, k_out = jax.random.split(key, 4)

    B, L, K, D, V = 2, 8, 3, 128, 100          # D=128 keeps the lane axis dense
    params = init_params(k_cls, V, D)

    sentences = jax.random.normal(k_sent, (B, L, D), jnp.float32)
    negative_samples = jax.random.normal(k_negs, (B, L, K, L, D), jnp.float32)
    ncells = L * (L + 1) // 2                  # DIORA chart size
    outside_h = jax.random.normal(k_out, (B, ncells, D), jnp.float32)

    # tile_rows=8 -> grid of 2 row-tiles, exercising the accumulator pattern.
    loss, ret = reconstruction_bert_sim_softmax_loss_forward(
        params, sentences, negative_samples, outside_h, info=None, tile_rows=8)
    jax.block_until_ready((loss, ret))

    # Pure-JAX reference mirroring the torch code exactly.
    cell_ref = outside_h[:, :L, :]
    neg_ref = jnp.transpose(jnp.diagonal(negative_samples, axis1=1, axis2=3),
                            (0, 3, 1, 2))
    s_pos = jnp.einsum('abc,abc->ab', sentences, cell_ref)[..., None]
    s_neg = jnp.einsum('abkc,abc->abk', neg_ref, cell_ref)
    scores = jnp.concatenate([s_pos, s_neg], axis=2).reshape(B * L, K + 1)
    loss_ref = jnp.mean(jax.nn.logsumexp(scores, axis=-1) - scores[:, 0])

    assert loss.shape == ()
    assert bool(jnp.isfinite(loss))
    assert bool(jnp.allclose(loss, loss_ref, rtol=1e-4, atol=1e-4)), (loss, loss_ref)
    assert 'reconstruct_bert_sim_softmax_loss' in ret

    print("KERNEL_OK")
</pallas_src>

<mosaic_0001>
module attributes {stable_mosaic.version = 11 : i64} {
  func.func @_recon_ce_kernel(%arg0: i32, %arg1: memref<8x128xf32, #tpu.memory_space<vmem>>, %arg2: memref<8x3x128xf32, #tpu.memory_space<vmem>>, %arg3: memref<8x128xf32, #tpu.memory_space<vmem>>, %arg4: memref<1x1xf32, #tpu.memory_space<vmem>>) attributes {dimension_semantics = [#tpu.dimension_semantics<arbitrary>], iteration_bounds = array<i64: 2>, scalar_prefetch = 0 : i64, scratch_operands = 0 : i64, tpu.core_type = #tpu.core_type<tc>, window_params = [{transform_indices = @transform_0, window_bounds = array<i64: 8, 128>}, {transform_indices = @transform_1, window_bounds = array<i64: 8, 3, 128>}, {transform_indices = @transform_2, window_bounds = array<i64: 8, 128>}, {pipeline_mode = #tpu.pipeline_mode<synchronous>, transform_indices = @transform_3, window_bounds = array<i64: 1, 1>}]} {
    %c0_i32 = arith.constant 0 : i32
    %0 = arith.cmpi eq, %arg0, %c0_i32 : i32
    %1 = arith.extui %0 : i1 to i32
    %c0_i32_0 = arith.constant 0 : i32
    %2 = arith.cmpi ne, %1, %c0_i32_0 : i32
    scf.if %2 {
      %cst_17 = arith.constant 0.000000e+00 : f32
      %46 = vector.broadcast %cst_17 : f32 to vector<1x1xf32>
      %c0_18 = arith.constant 0 : index
      %c0_19 = arith.constant 0 : index
      %47 = vector.load %arg4[%c0_18, %c0_19] : memref<1x1xf32, #tpu.memory_space<vmem>>, vector<1x1xf32>
      tpu.vector_store %arg4[%c0_18, %c0_19], %46 {strides = array<i32>} : memref<1x1xf32, #tpu.memory_space<vmem>>, vector<1x1xf32>,
    } else {
    }
    %c0 = arith.constant 0 : index
    %c0_1 = arith.constant 0 : index
    %3 = vector.load %arg3[%c0, %c0_1] : memref<8x128xf32, #tpu.memory_space<vmem>>, vector<8x128xf32>
    %c0_2 = arith.constant 0 : index
    %c0_3 = arith.constant 0 : index
    %4 = vector.load %arg1[%c0_2, %c0_3] : memref<8x128xf32, #tpu.memory_space<vmem>>, vector<8x128xf32>
    %c0_4 = arith.constant 0 : index
    %c0_5 = arith.constant 0 : index
    %c0_6 = arith.constant 0 : index
    %5 = vector.load %arg2[%c0_4, %c0_5, %c0_6] : memref<8x3x128xf32, #tpu.memory_space<vmem>>, vector<8x3x128xf32>
    %6 = arith.mulf %4, %3 : vector<8x128xf32>
    %cst = arith.constant dense<0.000000e+00> : vector<8xf32>
    %7 = vector.multi_reduction <add>, %6, %cst [1] : vector<8x128xf32> to vector<8xf32>
    %8 = vector.shape_cast %7 : vector<8xf32> to vector<8x1xf32>
    %9 = vector.shape_cast %3 : vector<8x128xf32> to vector<8x1x128xf32>
    %10 = vector.broadcast %9 : vector<8x1x128xf32> to vector<8x3x128xf32>
    %11 = arith.mulf %5, %10 : vector<8x3x128xf32>
    %cst_7 = arith.constant dense<0.000000e+00> : vector<8x3xf32>
    %12 = vector.multi_reduction <add>, %11, %cst_7 [2] : vector<8x3x128xf32> to vector<8x3xf32>
    %cst_8 = arith.constant dense<0xFF800000> : vector<8xf32>
    %13 = vector.multi_reduction <maximumf>, %12, %cst_8 [1] : vector<8x3xf32> to vector<8xf32>
    %14 = vector.shape_cast %13 : vector<8xf32> to vector<8x1xf32>
    %15 = arith.maximumf %8, %14 : vector<8x1xf32>
    %16 = arith.subf %8, %15 : vector<8x1xf32>
    %17 = math.exp %16 : vector<8x1xf32>
    %18 = vector.broadcast %15 : vector<8x1xf32> to vector<8x3xf32>
    %19 = arith.subf %12, %18 : vector<8x3xf32>
    %20 = math.exp %19 : vector<8x3xf32>
    %cst_9 = arith.constant dense<0.000000e+00> : vector<8xf32>
    %21 = vector.multi_reduction <add>, %20, %cst_9 [1] : vector<8x3xf32> to vector<8xf32>
    %22 = vector.shape_cast %21 : vector<8xf32> to vector<8x1xf32>
    %23 = arith.addf %17, %22 : vector<8x1xf32>
    %24 = math.log %23 : vector<8x1xf32>
    %25 = arith.addf %15, %24 : vector<8x1xf32>
    %26 = arith.subf %25, %8 : vector<8x1xf32>
    %c8_i32 = arith.constant 8 : i32
    %27 = arith.muli %arg0, %c8_i32 : i32
    %28 = tpu.iota {dimensions = array<i32: 0>} : vector<8x1xi32>
    %29 = vector.broadcast %27 : i32 to vector<8x1xi32>
    %30 = arith.addi %29, %28 : vector<8x1xi32>
    %c16_i32 = arith.constant 16 : i32
    %31 = vector.broadcast %c16_i32 : i32 to vector<8x1xi32>
    %32 = arith.cmpi slt, %30, %31 : vector<8x1xi32>
    %cst_10 = arith.constant 0.000000e+00 : f32
    %33 = vector.broadcast %cst_10 : f32 to vector<8x1xf32>
    %34 = arith.select %32, %26, %33 : vector<8x1xi1>, vector<8x1xf32>
    %c0_11 = arith.constant 0 : index
    %c0_12 = arith.constant 0 : index
    %35 = vector.load %arg4[%c0_11, %c0_12] : memref<1x1xf32, #tpu.memory_space<vmem>>, vector<1x1xf32>
    %36 = vector.shape_cast %34 : vector<8x1xf32> to vector<1x8x1xf32>
    %cst_13 = arith.constant dense<0.000000e+00> : vector<1xf32>
    %37 = vector.multi_reduction <add>, %36, %cst_13 [1, 2] : vector<1x8x1xf32> to vector<1xf32>
    %38 = vector.shape_cast %37 : vector<1xf32> to vector<1x1x1xf32>
    %39 = vector.extract %38[0, 0, 0] : f32 from vector<1x1x1xf32>
    %40 = vector.broadcast %39 : f32 to vector<1x1xf32>
    %41 = arith.addf %35, %40 : vector<1x1xf32>
    %c0_14 = arith.constant 0 : index
    %c0_15 = arith.constant 0 : index
    %42 = vector.load %arg4[%c0_14, %c0_15] : memref<1x1xf32, #tpu.memory_space<vmem>>, vector<1x1xf32>
    tpu.vector_store %arg4[%c0_14, %c0_15], %41 {strides = array<i32>} : memref<1x1xf32, #tpu.memory_space<vmem>>, vector<1x1xf32>,
    %c1_i32 = arith.constant 1 : i32
    %43 = arith.cmpi eq, %arg0, %c1_i32 : i32
    %44 = arith.extui %43 : i1 to i32
    %c0_i32_16 = arith.constant 0 : i32
    %45 = arith.cmpi ne, %44, %c0_i32_16 : i32
    scf.if %45 {
      %c0_17 = arith.constant 0 : index
      %c0_18 = arith.constant 0 : index
      %46 = vector.load %arg4[%c0_17, %c0_18] : memref<1x1xf32, #tpu.memory_space<vmem>>, vector<1x1xf32>
      %cst_19 = arith.constant 6.250000e-02 : f32
      %47 = vector.broadcast %cst_19 : f32 to vector<1x1xf32>
      %48 = arith.mulf %46, %47 : vector<1x1xf32>
      %c0_20 = arith.constant 0 : index
      %c0_21 = arith.constant 0 : index
      %49 = vector.load %arg4[%c0_20, %c0_21] : memref<1x1xf32, #tpu.memory_space<vmem>>, vector<1x1xf32>
      tpu.vector_store %arg4[%c0_20, %c0_21], %48 {strides = array<i32>} : memref<1x1xf32, #tpu.memory_space<vmem>>, vector<1x1xf32>,
    } else {
    }
    return
  }
  func.func @transform_0(%arg0: i32) -> (i32, i32) {
    %c0_i32 = arith.constant 0 : i32
    %c0_i32_0 = arith.constant 0 : i32
    return %arg0, %c0_i32 : i32, i32
  }
  func.func @transform_1(%arg0: i32) -> (i32, i32, i32) {
    %c0_i32 = arith.constant 0 : i32
    %c0_i32_0 = arith.constant 0 : i32
    %c0_i32_1 = arith.constant 0 : i32
    return %arg0, %c0_i32, %c0_i32_0 : i32, i32, i32
  }
  func.func @transform_2(%arg0: i32) -> (i32, i32) {
    %c0_i32 = arith.constant 0 : i32
    %c0_i32_0 = arith.constant 0 : i32
    return %arg0, %c0_i32 : i32, i32
  }
  func.func @transform_3(%arg0: i32) -> (i32, i32) {
    %c0_i32 = arith.constant 0 : i32
    %c0_i32_0 = arith.constant 0 : i32
    %c0_i32_1 = arith.constant 0 : i32
    return %c0_i32, %c0_i32_0 : i32, i32
  }
}

</mosaic_0001>

<llo_original>
// kernel: tpu_custom_call.1
$region0: #{tpu_custom_call.1}
  #allocation0 [shape = 'u32[]', space=smem, size = 0x4, offset = 0x4, fixed_abs, tag = 'smem constant byte address 0x4 - core index']
  #allocation1 [shape = 'u32[72,128]{1,0:T(1,128)}', space=vmem, size = 0x9000, scoped, tag = 'internal scratch']
  %s0 = inlined_call_operand.vmem [shape: f32[16,128], index: 0, kind: input, shape index: {}]
  %s1 = inlined_call_operand.vmem [shape: f32[16,3,128], index: 1, kind: input, shape index: {}]
  %s2 = inlined_call_operand.vmem [shape: f32[16,128], index: 2, kind: input, shape index: {}]
  %s3 = inlined_call_operand.hbm [shape: f32[1,1], index: 3, kind: output, shape index: {}]
  %s4 = sld [smem:[#allocation0]]
  $region53: #{tpu_custom_call.1} parent=0
    _
  %s6 = ssub.s32 1, %s4
  %s7 = scalar_select 0, %s6, %s4
  $region1: #{tpu_custom_call.1} parent=0
    #allocation2 [shape = 'u8[512]{0}', space=vmem, size = 0x400, scoped, tag = 'output window, operand 0, single buffered']
    #allocation3 [shape = 's32[2]{0}', space=sflag, size = 0x8, scoped, tag = 'scoped memory for tpu_custom_call.1']
    %8 = vsyncpa [#allocation3], 0
    loop: start=0, step=1, limit=4
    $region2: #{tpu_custom_call.1} parent=1 // loop_pre_header
      _
    $region3: #{tpu_custom_call.1} parent=1 // loop_header
      %s10 = sphi 0, %s14
      %p11 = scmp.ge.s32.totalorder %s10, 4
      %s20 = sphi 0, %s22
      %s23 = sphi 0, %s20
      %s24 = sphi 0, %s23
      %s40 = sphi 0, %s24
      %s46 = sphi 0, %s48
      %s49 = sphi 0, %s46
      %s50 = sphi 0, %s49
      %s66 = sphi 0, %s50
      %s72 = sphi 0, %s74
      %s75 = sphi 0, %s72
      %s76 = sphi 0, %s75
      %s92 = sphi 0, %s76
      %s96 = sphi 0, %s96
      %s98 = sphi 0, %s96
      %s99 = sphi 0, %s98
      %s113 = sphi 0, %s99
    $region4: #{tpu_custom_call.1} parent=1 // loop_header_branch
      %13 = sbr.rel (%p11) target = $region8
    $region5: #{tpu_custom_call.1} parent=1 // loop_body
      %s15 = ssub.s32 %s10, 1
      %s16 = ssub.s32 %s10, 2
      %s17 = sadd.s32 %s10, 1
      %s18 = ssub.s32 %s10, %s17
      %p19 = scmp.eq.s32.totalorder %s18, 0
      %s21 = sadd.s32 %s20, 1
      %s22 = scalar_select %p19, %s20, %s21
      %p25 = pneg %p19
      %p26 = scmp.eq.s32.totalorder %s10, 1
      %p27 = por %p25, %p26
      %p28 = scmp.ne.s32.totalorder %s20, %s23
      %p29 = scmp.eq.s32.totalorder %s10, 0
      %p30 = por %p28, %p29
      %p31 = scmp.ne.s32.totalorder %s20, %s23
      %p32 = scmp.eq.s32.totalorder %s15, 1
      %p33 = por %p31, %p32
      %p34 = scmp.ne.s32.totalorder %s23, %s24
      %p35 = scmp.eq.s32.totalorder %s15, 0
      %p36 = por %p34, %p35
      %p37 = scmp.ne.s32.totalorder %s23, %s24
      %p38 = scmp.eq.s32.totalorder %s16, 1
      %p39 = por %p37, %p38
      %p41 = scmp.ne.s32.totalorder %s24, %s40
      %p42 = scmp.eq.s32.totalorder %s16, 0
      %p43 = por %p41, %p42
      %s44 = ssub.s32 %s10, %s17
      %p45 = scmp.eq.s32.totalorder %s44, 0
      %s47 = sadd.s32 %s46, 1
      %s48 = scalar_select %p45, %s46, %s47
      %p51 = pneg %p45
      %p52 = scmp.eq.s32.totalorder %s10, 1
      %p53 = por %p51, %p52
      %p54 = scmp.ne.s32.totalorder %s46, %s49
      %p55 = scmp.eq.s32.totalorder %s10, 0
      %p56 = por %p54, %p55
      %p57 = scmp.ne.s32.totalorder %s46, %s49
      %p58 = scmp.eq.s32.totalorder %s15, 1
      %p59 = por %p57, %p58
      %p60 = scmp.ne.s32.totalorder %s49, %s50
      %p61 = scmp.eq.s32.totalorder %s15, 0
      %p62 = por %p60, %p61
      %p63 = scmp.ne.s32.totalorder %s49, %s50
      %p64 = scmp.eq.s32.totalorder %s16, 1
      %p65 = por %p63, %p64
      %p67 = scmp.ne.s32.totalorder %s50, %s66
      %p68 = scmp.eq.s32.totalorder %s16, 0
      %p69 = por %p67, %p68
      %s70 = ssub.s32 %s10, %s17
      %p71 = scmp.eq.s32.totalorder %s70, 0
      %s73 = sadd.s32 %s72, 1
      %s74 = scalar_select %p71, %s72, %s73
      %p77 = pneg %p71
      %p78 = scmp.eq.s32.totalorder %s10, 1
      %p79 = por %p77, %p78
      %p80 = scmp.ne.s32.totalorder %s72, %s75
      %p81 = scmp.eq.s32.totalorder %s10, 0
      %p82 = por %p80, %p81
      %p83 = scmp.ne.s32.totalorder %s72, %s75
      %p84 = scmp.eq.s32.totalorder %s15, 1
      %p85 = por %p83, %p84
      %p86 = scmp.ne.s32.totalorder %s75, %s76
      %p87 = scmp.eq.s32.totalorder %s15, 0
      %p88 = por %p86, %p87
      %p89 = scmp.ne.s32.totalorder %s75, %s76
      %p90 = scmp.eq.s32.totalorder %s16, 1
      %p91 = por %p89, %p90
      %p93 = scmp.ne.s32.totalorder %s76, %s92
      %p94 = scmp.eq.s32.totalorder %s16, 0
      %p95 = por %p93, %p94
      %s97 = sadd.s32 %s96, 1
      %p100 = scmp.eq.s32.totalorder %s10, 1
      %p101 = scmp.ne.s32.totalorder %s96, %s98
      %p102 = scmp.eq.s32.totalorder %s10, 0
      %p103 = por %p101, %p102
      %p104 = scmp.ne.s32.totalorder %s96, %s98
      %p105 = scmp.eq.s32.totalorder %s15, 1
      %p106 = por %p104, %p105
      %p107 = scmp.ne.s32.totalorder %s98, %s99
      %p108 = scmp.eq.s32.totalorder %s15, 0
      %p109 = por %p107, %p108
      %p110 = scmp.ne.s32.totalorder %s98, %s99
      %p111 = scmp.eq.s32.totalorder %s16, 1
      %p112 = por %p110, %p111
      %p114 = scmp.ne.s32.totalorder %s99, %s113
      %p115 = scmp.eq.s32.totalorder %s16, 0
      %p116 = por %p114, %p115
      %p117 = scmp.le.s32.totalorder 1, %s10
      %p118 = scmp.lt.s32.totalorder %s10, 3
      %p119 = pnand %p117, %p118
      %p120 = pneg %p119
      // Predicated region
      $region9: #{tpu_custom_call.1} parent=5 // pred_check
        _
      $region10: #{tpu_custom_call.1} parent=5 // pred_check_branch
        %122 = sbr.rel (%p119) target = $region12
      $region11: #{tpu_custom_call.1} parent=5 // pred_region
        %s123 = ssub.s32 %s10, 1
      $region12: #{tpu_custom_call.1} parent=5 // pred_fallthru
        _
      %p124 = scmp.lt.s32.totalorder %s10, 2
      // Predicated region
      $region13: #{tpu_custom_call.1} parent=5 // pred_check
        %p125 = pneg %p124
      $region14: #{tpu_custom_call.1} parent=5 // pred_check_branch
        %127 = sbr.rel (%p125) target = $region16
      $region15: #{tpu_custom_call.1} parent=5 // pred_region
        // Predicated region
        $region17: #{tpu_custom_call.1} parent=15 // pred_check
          %p128 = pneg %p30
        $region18: #{tpu_custom_call.1} parent=15 // pred_check_branch
          %130 = sbr.rel (%p128) target = $region20
        $region19: #{tpu_custom_call.1} parent=15 // pred_region
          %p131 = scmp.lt.s32.totalorder %s10, 1
          %s132 = scalar_select %p131, %s10, 1
          %s133 = smul.addr %s132, 8
          %s134 = scalar_lea.vmem %s0, %s133
        $region20: #{tpu_custom_call.1} parent=15 // pred_fallthru
          _
        // Predicated region
        $region21: #{tpu_custom_call.1} parent=15 // pred_check
          %p135 = pneg %p56
        $region22: #{tpu_custom_call.1} parent=15 // pred_check_branch
          %137 = sbr.rel (%p135) target = $region24
        $region23: #{tpu_custom_call.1} parent=15 // pred_region
          %s138 = smul.u32 8, %s10
          %p139 = scmp.lt.s32.totalorder %s138, 15
          %s140 = scalar_select %p139, %s138, 15
          %s141 = smul.addr %s140, 4
          %s142 = scalar_lea.vmem %s1, %s141
          %s143 = smul.u32 8, %s10
        $region24: #{tpu_custom_call.1} parent=15 // pred_fallthru
          _
        // Predicated region
        $region25: #{tpu_custom_call.1} parent=15 // pred_check
          %p144 = pneg %p82
        $region26: #{tpu_custom_call.1} parent=15 // pred_check_branch
          %146 = sbr.rel (%p144) target = $region28
        $region27: #{tpu_custom_call.1} parent=15 // pred_region
          %p147 = scmp.lt.s32.totalorder %s10, 1
          %s148 = scalar_select %p147, %s10, 1
          %s149 = smul.addr %s148, 8
          %s150 = scalar_lea.vmem %s2, %s149
        $region28: #{tpu_custom_call.1} parent=15 // pred_fallthru
          _
      $region16: #{tpu_custom_call.1} parent=5 // pred_fallthru
        _
      %p151 = scmp.le.s32.totalorder 1, %s10
      %p152 = scmp.lt.s32.totalorder %s10, 3
      %p153 = pnand %p151, %p152
      %p154 = pneg %p153
      // Predicated region
      $region29: #{tpu_custom_call.1} parent=5 // pred_check
        _
      $region30: #{tpu_custom_call.1} parent=5 // pred_check_branch
        %156 = sbr.rel (%p153) target = $region32
      $region31: #{tpu_custom_call.1} parent=5 // pred_region
        %s157 = ssub.s32 %s10, 1
        %p158 = scmp.lt.s32.totalorder %s15, 1
        %s159 = scalar_select %p158, %s15, 1
        %s160 = smul.addr %s159, 8
        %s161 = scalar_lea.vmem %s0, %s160
        %p162 = pneg %p36
        %p163 = pneg %p33
        %s164 = smul.u32 8, %s15
        %p165 = scmp.lt.s32.totalorder %s164, 15
        %s166 = scalar_select %p165, %s164, 15
        %s167 = smul.addr %s166, 4
        %s168 = scalar_lea.vmem %s1, %s167
        %p169 = pneg %p62
        %p170 = pneg %p59
        %p171 = scmp.lt.s32.totalorder %s15, 1
        %s172 = scalar_select %p171, %s15, 1
        %s173 = smul.addr %s172, 8
        %s174 = scalar_lea.vmem %s2, %s173
        %p175 = pneg %p88
        %p176 = pneg %p85
        %p177 = pneg %p109
        %p178 = pneg %p106
        %p179 = scmp.lt.s32.totalorder %s15, 1
        %s180 = scalar_select %p179, %s15, 1
        %s181 = smul.addr %s180, 8
        %s182 = scalar_lea.vmem %s0, %s181
        %s183 = smul.u32 8, %s15
        %p184 = scmp.lt.s32.totalorder %s183, 15
        %s185 = scalar_select %p184, %s183, 15
        %s186 = smul.addr %s185, 4
        %s187 = scalar_lea.vmem %s1, %s186
        %s188 = smul.u32 8, %s15
        %p189 = scmp.lt.s32.totalorder %s15, 1
        %s190 = scalar_select %p189, %s15, 1
        %s191 = smul.addr %s190, 8
        %s192 = scalar_lea.vmem %s2, %s191
        %p193 = scmp.eq.s32.totalorder %s15, 0
        // Predicated region
        $region33: #{tpu_custom_call.1} parent=31 // pred_check
          %p194 = pneg %p193
        $region34: #{tpu_custom_call.1} parent=31 // pred_check_branch
          %196 = sbr.rel (%p194) target = $region36
        $region35: #{tpu_custom_call.1} parent=31 // pred_region
          %vm197 = vcmask 0
          %198 = vst.msk [vmem:[#allocation2] sm:$0x1] %vm197, 0.0
        $region36: #{tpu_custom_call.1} parent=31 // pred_fallthru
          _
        %v199 = vld [vmem:[%s192] sm:$0xff]
        %v200 = vld [vmem:[%s182] sm:$0xff]
        %v201 = vld [vmem:[%s187] sm:$0x7]
        %v202 = vld [vmem:[%s187 + $0x4] sm:$0x7]
        %v203 = vld [vmem:[%s187 + $0x8] sm:$0x7]
        %v204 = vld [vmem:[%s187 + $0xc] sm:$0x7]
        %v205 = vld [vmem:[%s187 + $0x10] sm:$0x7]
        %v206 = vld [vmem:[%s187 + $0x14] sm:$0x7]
        %v207 = vld [vmem:[%s187 + $0x18] sm:$0x7]
        %v208 = vld [vmem:[%s187 + $0x1c] sm:$0x7]
        %v209 = vmul.f32 %v200, %v199
        %210 = vadd.xlane.f32.xlu0 %v209
        %v211 = vpop.xlane.xlu0 %210
        %v213 = vrot.slane %v199, 1
        %v214 = vrot.slane %v199, 2
        %v215 = vrot.slane %v199, 3
        %v216 = vrot.slane %v199, 4
        %v217 = vrot.slane %v199, 5
        %v218 = vrot.slane %v199, 6
        %v219 = vrot.slane %v199, 7
        %v220 = vperm.slane %v199, 0
        %v221 = vperm.slane %v213, 0
        %v222 = vperm.slane %v214, 0
        %v223 = vperm.slane %v215, 0
        %v224 = vperm.slane %v216, 0
        %v225 = vperm.slane %v217, 0
        %v226 = vperm.slane %v218, 0
        %v227 = vperm.slane %v219, 0
        %v236 = vmul.f32 %v201, %v220
        %v237 = vmul.f32 %v202, %v221
        %v238 = vmul.f32 %v203, %v222
        %v239 = vmul.f32 %v204, %v223
        %v240 = vmul.f32 %v205, %v224
        %v241 = vmul.f32 %v206, %v225
        %v242 = vmul.f32 %v207, %v226
        %v243 = vmul.f32 %v208, %v227
        %vm244 = vcmask 1042432
        %v245 = vsel %vm244, %v236, 0.0
        %246 = vadd.xlane.f32.xlu0 %v245
        %v247 = vpop.xlane.xlu0 %246
        %v248 = vsel %vm244, %v237, 0.0
        %249 = vadd.xlane.f32.xlu0 %v248
        %v250 = vpop.xlane.xlu0 %249
        %v251 = vsel %vm244, %v238, 0.0
        %252 = vadd.xlane.f32.xlu0 %v251
        %v253 = vpop.xlane.xlu0 %252
        %v254 = vsel %vm244, %v239, 0.0
        %255 = vadd.xlane.f32.xlu0 %v254
        %v256 = vpop.xlane.xlu0 %255
        %v257 = vsel %vm244, %v240, 0.0
        %258 = vadd.xlane.f32.xlu0 %v257
        %v259 = vpop.xlane.xlu0 %258
        %v260 = vsel %vm244, %v241, 0.0
        %261 = vadd.xlane.f32.xlu0 %v260
        %v262 = vpop.xlane.xlu0 %261
        %v263 = vsel %vm244, %v242, 0.0
        %264 = vadd.xlane.f32.xlu0 %v263
        %v265 = vpop.xlane.xlu0 %264
        %v266 = vsel %vm244, %v243, 0.0
        %267 = vadd.xlane.f32.xlu0 %v266
        %v268 = vpop.xlane.xlu0 %267
        %v277 = vlaneseq
        %v278 = vand.u32 %v277, 127
        %v279 = vperm.slane %v247, %v278
        %v280 = vperm.slane %v250, %v278
        %v281 = vperm.slane %v253, %v278
        %v282 = vperm.slane %v256, %v278
        %v283 = vperm.slane %v259, %v278
        %v284 = vperm.slane %v262, %v278
        %v285 = vperm.slane %v265, %v278
        %v286 = vperm.slane %v268, %v278
        %vm287 = vcmask 1041409
        %v288 = vsel %vm287, %v280, %v279
        %vm289 = vcmask 1042434
        %v290 = vsel %vm289, %v281, %v288
        %vm291 = vcmask 1043459
        %v292 = vsel %vm291, %v282, %v290
        %vm293 = vcmask 1044484
        %v294 = vsel %vm293, %v283, %v292
        %vm295 = vcmask 1045509
        %v296 = vsel %vm295, %v284, %v294
        %vm297 = vcmask 1046534
        %v298 = vsel %vm297, %v285, %v296
        %vm299 = vcmask 1047559
        %v300 = vsel %vm299, %v286, %v298
        %vm302 = vcmask 23552
        %v303 = vsel %vm302, %v300, -inf
        %304 = vmax.xlane.f32.xlu0 %v303
        %v305 = vpop.xlane.xlu0 %304
        %v306 = vmax.f32 %v211, %v305
        %v307 = vsub.f32 %v211, %v306
        %v308 = vmul.f32 %v307, 1.442695
        %v309 = vpow.pop %v308
        %v311 = vperm.slane %v306, 0
        %v312 = vperm.slane %v306, 1
        %v313 = vperm.slane %v306, 2
        %v314 = vperm.slane %v306, 3
        %v315 = vperm.slane %v306, 4
        %v316 = vperm.slane %v306, 5
        %v317 = vperm.slane %v306, 6
        %v318 = vperm.slane %v306, 7
        %v327 = vsub.f32 %v247, %v311
        %v328 = vsub.f32 %v250, %v312
        %v329 = vsub.f32 %v253, %v313
        %v330 = vsub.f32 %v256, %v314
        %v331 = vsub.f32 %v259, %v315
        %v332 = vsub.f32 %v262, %v316
        %v333 = vsub.f32 %v265, %v317
        %v334 = vsub.f32 %v268, %v318
        %v335 = vmul.f32 %v327, 1.442695
        %v336 = vpow.pop %v335
        %v337 = vmul.f32 %v328, 1.442695
        %v338 = vpow.pop %v337
        %v339 = vmul.f32 %v329, 1.442695
        %v340 = vpow.pop %v339
        %v341 = vmul.f32 %v330, 1.442695
        %v342 = vpow.pop %v341
        %v343 = vmul.f32 %v331, 1.442695
        %v344 = vpow.pop %v343
        %v345 = vmul.f32 %v332, 1.442695
        %v346 = vpow.pop %v345
        %v347 = vmul.f32 %v333, 1.442695
        %v348 = vpow.pop %v347
        %v349 = vmul.f32 %v334, 1.442695
        %v350 = vpow.pop %v349
        %359 = vset.pattern.permute.xlu0 0
        %360 = vperm.xlu0 %359, %v336
        %v361 = vpop.permute.xlu0 %360
        %362 = vset.pattern.permute.xlu0 0
        %363 = vperm.xlu0 %362, %v338
        %v364 = vpop.permute.xlu0 %363
        %365 = vset.pattern.permute.xlu0 0
        %366 = vperm.xlu0 %365, %v340
        %v367 = vpop.permute.xlu0 %366
        %368 = vset.pattern.permute.xlu0 0
        %369 = vperm.xlu0 %368, %v342
        %v370 = vpop.permute.xlu0 %369
        %371 = vset.pattern.permute.xlu0 0
        %372 = vperm.xlu0 %371, %v344
        %v373 = vpop.permute.xlu0 %372
        %374 = vset.pattern.permute.xlu0 0
        %375 = vperm.xlu0 %374, %v346
        %v376 = vpop.permute.xlu0 %375
        %377 = vset.pattern.permute.xlu0 0
        %378 = vperm.xlu0 %377, %v348
        %v379 = vpop.permute.xlu0 %378
        %380 = vset.pattern.permute.xlu0 0
        %381 = vperm.xlu0 %380, %v350
        %v382 = vpop.permute.xlu0 %381
        %v383 = vperm.slane %v361, %v278
        %v384 = vperm.slane %v364, %v278
        %v385 = vperm.slane %v367, %v278
        %v386 = vperm.slane %v370, %v278
        %v387 = vperm.slane %v373, %v278
        %v388 = vperm.slane %v376, %v278
        %v389 = vperm.slane %v379, %v278
        %v390 = vperm.slane %v382, %v278
        %v391 = vsel %vm287, %v384, %v383
        %v392 = vsel %vm289, %v385, %v391
        %v393 = vsel %vm291, %v386, %v392
        %v394 = vsel %vm293, %v387, %v393
        %v395 = vsel %vm295, %v388, %v394
        %v396 = vsel %vm297, %v389, %v395
        %v397 = vsel %vm299, %v390, %v396
        %v399 = vsel %vm302, %v397, 0.0
        %400 = vadd.xlane.f32.xlu0 %v399
        %v401 = vpop.xlane.xlu0 %400
        %v402 = vadd.f32 %v309, %v401
        %v403 = vlog2.pop %v402
        %v404 = vmul.f32 %v403, 0.6931472
        %v405 = vadd.f32 %v306, %v404
        %v406 = vsub.f32 %v405, %v211
        %s407 = smul.u32 %s15, 8
        %v408 = vlaneseq
        %v409 = vshrl.u32 %v408, 7
        %v410 = vstv %s407
        %v411 = vadd.s32 %v410, %v409
        %vm412 = vcmp.lt.s32.totalorder %v411, 16
        %v413 = vsel %vm412, %v406, 0.0
        %v414 = vld [vmem:[#allocation2] sm:$0x1]
        %vm415 = vcmask 7168
        %v416 = vsel %vm415, %v413, 0.0
        %417 = vadd.xlane.f32.xlu0 %v416
        %v418 = vpop.xlane.xlu0 %417
        %v419 = vrot.slane %v418, 4
        %v420 = vadd.f32 %v418, %v419
        %v421 = vrot.slane %v420, 2
        %v422 = vadd.f32 %v420, %v421
        %v423 = vrot.slane %v422, 1
        %v424 = vadd.f32 %v422, %v423
        %s425 = vtos %v424
        %v426 = vstv %s425
        %v427 = vadd.f32 %v414, %v426
        %vm428 = vcmask 0
        %429 = vst.msk [vmem:[#allocation2] sm:$0x1] %vm428, %v427
        %p430 = scmp.eq.s32.totalorder %s15, 1
        // Predicated region
        $region37: #{tpu_custom_call.1} parent=31 // pred_check
          %p431 = pneg %p430
        $region38: #{tpu_custom_call.1} parent=31 // pred_check_branch
          %433 = sbr.rel (%p431) target = $region40
        $region39: #{tpu_custom_call.1} parent=31 // pred_region
          %v434 = vld [vmem:[#allocation2] sm:$0x1]
          %v435 = vmul.f32 %v434, 0.0625
          %436 = vst.msk [vmem:[#allocation2] sm:$0x1] %vm428, %v435
        $region40: #{tpu_custom_call.1} parent=31 // pred_fallthru
          _
        // Predicated region
        $region41: #{tpu_custom_call.1} parent=31 // pred_check
          %p437 = pneg %p106
        $region42: #{tpu_custom_call.1} parent=31 // pred_check_branch
          %439 = sbr.rel (%p437) target = $region44
        $region43: #{tpu_custom_call.1} parent=31 // pred_region
          %441 = vsyncadd [#allocation3], 0
          %s443 = sshll.u32 [#allocation2], 4
          %s444 = int_to_ptr.vmem [resolvable:$true] %s443
          %s445 = sshll.u32 %s3, 4
          %s446 = int_to_ptr.hbm [resolvable:$true] %s445
          %448 = dma.vmem_to_hbm [thread:$0]  %s444, 16, %s446, [#allocation3]
        $region44: #{tpu_custom_call.1} parent=31 // pred_fallthru
          _
        // Predicated region
        $region45: #{tpu_custom_call.1} parent=31 // pred_check
          %p449 = pneg %p106
        $region46: #{tpu_custom_call.1} parent=31 // pred_check_branch
          %451 = sbr.rel (%p449) target = $region48
        $region47: #{tpu_custom_call.1} parent=31 // pred_region
          %453 = dma.done [#allocation3], 16
        $region48: #{tpu_custom_call.1} parent=31 // pred_fallthru
          _
      $region32: #{tpu_custom_call.1} parent=5 // pred_fallthru
        _
      %p454 = scmp.le.s32.totalorder 2, %s10
      // Predicated region
      $region49: #{tpu_custom_call.1} parent=5 // pred_check
        %p455 = pneg %p454
      $region50: #{tpu_custom_call.1} parent=5 // pred_check_branch
        %457 = sbr.rel (%p455) target = $region52
      $region51: #{tpu_custom_call.1} parent=5 // pred_region
        %s458 = ssub.s32 %s10, 2
      $region52: #{tpu_custom_call.1} parent=5 // pred_fallthru
        _
    $region6: #{tpu_custom_call.1} parent=1 // loop_footer
      %s14 = sadd.s32 1, %s10
    $region7: #{tpu_custom_call.1} parent=1 // loop_footer_branch
      %9 = sbr.rel target = $region3
    $region8: #{tpu_custom_call.1} parent=1 // loop_exit
      _
    %459 = vsyncpa [#allocation3], 1
    %s460 = scalar_lea.sflag [#allocation3], 1
    %461 = vsyncpa %s460, 1

</llo_original>
